<compile_context>
chip_gen: v5e
topology: v5e:2x2
jax: 0.10.0
libtpu: 0.0.40
codegen_flags: <defaults>
</compile_context>

<pallas_src>
import jax
import jax.numpy as jnp
from jax.experimental import pallas as pl
from jax.experimental.pallas import tpu as pltpu


H1, H2 = 20, 100          # true hidden widths (to_canonical branch / hnn branch)
H1P, H2P = 24, 104        # sublane-padded (multiple of 8) hidden widths


def ihnn_kernel(x_ref, w2t_ref, w5t_ref, cols_ref, aux_ref, out_ref):
    """One batch tile (transposed layout): x (2, TB) -> out (2, TB) = [H; can_momentum]."""
    f32 = jnp.float32

    q = x_ref[0:1, :]                 # (1, TB) generalized coordinate
    p = x_ref[1:2, :]                 # (1, TB) original momentum

    # Column slab (H2P, 8); see pack_params() for the layout.
    w1c0 = cols_ref[0:H1P, 0:1]       # layer1 weight column for q   (24, 1)
    w1c1 = cols_ref[0:H1P, 1:2]       # layer1 weight column for p
    b1   = cols_ref[0:H1P, 2:3]       # layer1 bias
    b2   = cols_ref[0:H1P, 3:4]       # layer2 bias
    w4c0 = cols_ref[:, 4:5]           # layer4 weight column for q   (104, 1)
    w4c1 = cols_ref[:, 5:6]           # layer4 weight column for can_momentum
    b4   = cols_ref[:, 6:7]           # layer4 bias
    b5   = cols_ref[:, 7:8]           # layer5 bias

    # Row slab (24, 128): layer3/layer6 weights as 8-row blocks (row 0 live,
    # rows 1..7 zero) so the reductions run on the MXU as plain M=8 matmuls.
    w3blk = aux_ref[0:8, 0:H1P]       # (8, 24)
    w6blk = aux_ref[8:16, 0:H2P]      # (8, 104)
    b3 = aux_ref[16:17, 0:1]          # (1, 1) layer3 bias

    # --- to_canonical(x): layer1 (rank-1 VPU) -> layer2 (MXU) -> layer3 (MXU) ----
    y1 = jnp.tanh(w1c0 * q + w1c1 * p + b1)                                    # (24, TB)
    y2 = jnp.tanh(jnp.dot(w2t_ref[...], y1, preferred_element_type=f32) + b2)  # (24, TB)
    cm = jnp.dot(w3blk, y2, preferred_element_type=f32)[0:1, :] + b3           # (1, TB)

    # --- hnn(can_coords = (q, can_momentum)): layer4 -> layer5 -> layer6 --------
    z1 = jnp.tanh(w4c0 * q + w4c1 * cm + b4)                                   # (104, TB)
    z2 = jnp.tanh(jnp.dot(w5t_ref[...], z1, preferred_element_type=f32) + b5)  # (104, TB)
    H = jnp.dot(w6blk, z2, preferred_element_type=f32)[0:1, :]                 # (1, TB)

    # Lane-dense fused output: row 0 = H, row 1 = can_momentum.
    out_ref[0:1, :] = H.astype(out_ref.dtype)
    out_ref[1:2, :] = cm.astype(out_ref.dtype)


def pack_params(params):
    """Pack the 11 weights/biases into four zero-padded f32 slabs for the
    transposed (hidden-on-sublanes, batch-on-lanes) kernel layout."""
    f32 = jnp.float32
    w1, b1 = params["w1"].astype(f32), params["b1"].astype(f32)   # (2,20), (1,20)
    w2, b2 = params["w2"].astype(f32), params["b2"].astype(f32)   # (20,20), (1,20)
    w3, b3 = params["w3"].astype(f32), params["b3"].astype(f32)   # (20,1), (1,1)
    w4, b4 = params["w4"].astype(f32), params["b4"].astype(f32)   # (2,100), (1,100)
    w5, b5 = params["w5"].astype(f32), params["b5"].astype(f32)   # (100,100), (1,100)
    w6 = params["w6"].astype(f32)                                 # (100,1)

    h1, h2 = w2.shape[0], w5.shape[0]
    assert (h1, h2) == (H1, H2) and w1.shape[0] == 2 and w4.shape[0] == 2

    # Transposed matmul weights: out[h, b] = sum_k W[h, k] * in[k, b].
    w2t = jnp.zeros((H1P, H1P), f32).at[:h1, :h1].set(w2.T)
    w5t = jnp.zeros((H2P, H2P), f32).at[:h2, :h2].set(w5.T)

    # Column slab: per-hidden-unit vectors used by the rank-1 layers 1 and 4.
    cols = jnp.zeros((H2P, 8), f32)
    cols = cols.at[:h1, 0].set(w1[0])
    cols = cols.at[:h1, 1].set(w1[1])
    cols = cols.at[:h1, 2].set(b1[0])
    cols = cols.at[:h1, 3].set(b2[0])
    cols = cols.at[:h2, 4].set(w4[0])
    cols = cols.at[:h2, 5].set(w4[1])
    cols = cols.at[:h2, 6].set(b4[0])
    cols = cols.at[:h2, 7].set(b5[0])

    # Row slab: layer3 / layer6 weights as 8-row MXU blocks + layer3 bias scalar.
    aux = jnp.zeros((24, 128), f32)
    aux = aux.at[0, :h1].set(w3[:, 0])
    aux = aux.at[8, :h2].set(w6[:, 0])
    aux = aux.at[16, 0].set(b3[0, 0])
    return w2t, w5t, cols, aux


def _pick_tb(B, block_b):
    """Batch (lane-axis) tile: a multiple of 128 keeps DMAs/stores lane-dense; when
    B > 128 aim for >= 2 roughly-equal grid steps so the 'parallel' batch axis can
    shard across both TensorCores on v7x (extra steps are ~0.35us on v5e/v6e)."""
    if B <= 128:
        return B                                   # single block (block dim == array dim)
    block_b = max(128, (block_b // 128) * 128)
    tb = (((B + 1) // 2) + 127) // 128 * 128       # ~half the batch, rounded up to 128
    return max(128, min(block_b, tb))


def ihnn_forward(x, params, *, block_b=2048):
    """iHNN forward pass: returns (H (B, 1), can_coords (B, 2))."""
    B, d_in = x.shape
    assert d_in == 2, "iHNN.forward requires d_in == 2 (q, p)"
    x = x.astype(jnp.float32)
    w2t, w5t, cols, aux = pack_params(params)
    xT = x.T                                       # (2, B): batch on lanes

    TB = _pick_tb(B, block_b)
    grid = (pl.cdiv(B, TB),)

    cost = pl.CostEstimate(
        flops=int(2 * B * (2 * H1 + H1 * H1 + H1 + 2 * H2 + H2 * H2 + H2)),
        transcendentals=int(2 * B * (H1 + H2)),
        bytes_accessed=int(4 * (2 * B + 2 * B)
                           + 4 * (H1P * H1P + H2P * H2P + H2P * 8 + 24 * 128)),
    )

    outT = pl.pallas_call(
        ihnn_kernel,
        out_shape=jax.ShapeDtypeStruct((2, B), jnp.float32),
        grid=grid,
        in_specs=[
            pl.BlockSpec((2, TB), lambda i: (0, i)),          # x^T: blocked over batch
            pl.BlockSpec((H1P, H1P), lambda i: (0, 0)),       # layer2 weight (VMEM-resident)
            pl.BlockSpec((H2P, H2P), lambda i: (0, 0)),       # layer5 weight (VMEM-resident)
            pl.BlockSpec((H2P, 8), lambda i: (0, 0)),         # column slab
            pl.BlockSpec((24, 128), lambda i: (0, 0)),        # row slab (w3/w6/b3)
        ],
        out_specs=pl.BlockSpec((2, TB), lambda i: (0, i)),
        compiler_params=pltpu.CompilerParams(
            dimension_semantics=("parallel",)),               # shard batch across TCs on v7x
        cost_estimate=cost,
    )(xT, w2t, w5t, cols, aux)

    H = outT[0:1, :].T                                        # (B, 1)
    can_momentum = outT[1:2, :].T                             # (B, 1)
    can_coords = jnp.concatenate([x[:, 0:1], can_momentum], axis=1)
    return H, can_coords


def init_params(key, d_in=2):
    """Deterministic init mimicking torch.nn.Linear defaults: U(-1/sqrt(fan_in), +)."""
    def linear(k, fan_in, fan_out, bias=True):
        kw, kb = jax.random.split(k)
        bound = 1.0 / jnp.sqrt(jnp.float32(fan_in))
        w = jax.random.uniform(kw, (fan_in, fan_out), jnp.float32, -bound, bound)
        b = (jax.random.uniform(kb, (1, fan_out), jnp.float32, -bound, bound)
             if bias else None)
        return w, b

    keys = jax.random.split(key, 6)
    w1, b1 = linear(keys[0], d_in, 20)
    w2, b2 = linear(keys[1], 20, 20)
    w3, b3 = linear(keys[2], 20, 1)
    w4, b4 = linear(keys[3], d_in, 100)
    w5, b5 = linear(keys[4], 100, 100)
    w6, _ = linear(keys[5], 100, 1, bias=False)   # layer6: bias=None
    return dict(w1=w1, b1=b1, w2=w2, b2=b2, w3=w3, b3=b3,
                w4=w4, b4=b4, w5=w5, b5=b5, w6=w6)


def ihnn_forward_ref(x, p):
    """Pure-JAX reference for verification (unpadded weights)."""
    act = jnp.tanh
    y1 = act(x @ p["w1"] + p["b1"])
    y2 = act(y1 @ p["w2"] + p["b2"])
    cm = y2 @ p["w3"] + p["b3"]
    cc = jnp.concatenate([x[:, 0:1], cm], axis=1)
    z1 = act(cc @ p["w4"] + p["b4"])
    z2 = act(z1 @ p["w5"] + p["b5"])
    H = z2 @ p["w6"]
    return H, cc


if __name__ == "__main__":
    key = jax.random.PRNGKey(0)
    k_param, k_x = jax.random.split(key)

    d_in = 2          # (q, p) pendulum coordinates; forward() requires d_in == 2
    params = init_params(k_param, d_in=d_in)

    # batch=256 -> TB=128, grid=(2,): exercises the pipelined / megacore path.
    # batch=64  -> TB=64, grid=(1,): exercises the small single-block path.
    for batch in (256, 64):
        kx = jax.random.fold_in(k_x, batch)
        x = jax.random.normal(kx, (batch, d_in), jnp.float32)

        H, can_coords = ihnn_forward(x, params)
        H = jax.block_until_ready(H)
        can_coords = jax.block_until_ready(can_coords)

        H_ref, cc_ref = ihnn_forward_ref(x, params)
        assert H.shape == (batch, 1) and can_coords.shape == (batch, 2)
        assert jnp.allclose(H, H_ref, atol=1e-5, rtol=1e-5)
        assert jnp.allclose(can_coords, cc_ref, atol=1e-5, rtol=1e-5)

    print("KERNEL_OK")
</pallas_src>

<mosaic_0001>
module attributes {stable_mosaic.version = 11 : i64} {
  func.func @ihnn_kernel(%arg0: i32, %arg1: memref<2x128xf32, #tpu.memory_space<vmem>>, %arg2: memref<24x24xf32, #tpu.memory_space<vmem>>, %arg3: memref<104x104xf32, #tpu.memory_space<vmem>>, %arg4: memref<104x8xf32, #tpu.memory_space<vmem>>, %arg5: memref<24x128xf32, #tpu.memory_space<vmem>>, %arg6: memref<2x128xf32, #tpu.memory_space<vmem>>) attributes {dimension_semantics = [#tpu.dimension_semantics<parallel>], iteration_bounds = array<i64: 2>, scalar_prefetch = 0 : i64, scratch_operands = 0 : i64, tpu.core_type = #tpu.core_type<tc>, window_params = [{transform_indices = @transform_0, window_bounds = array<i64: 2, 128>}, {pipeline_mode = #tpu.pipeline_mode<synchronous>, transform_indices = @transform_1, window_bounds = array<i64: 24, 24>}, {pipeline_mode = #tpu.pipeline_mode<synchronous>, transform_indices = @transform_2, window_bounds = array<i64: 104, 104>}, {pipeline_mode = #tpu.pipeline_mode<synchronous>, transform_indices = @transform_3, window_bounds = array<i64: 104, 8>}, {pipeline_mode = #tpu.pipeline_mode<synchronous>, transform_indices = @transform_4, window_bounds = array<i64: 24, 128>}, {transform_indices = @transform_5, window_bounds = array<i64: 2, 128>}]} {
    %c0 = arith.constant 0 : index
    %c0_0 = arith.constant 0 : index
    %0 = vector.load %arg1[%c0, %c0_0] : memref<2x128xf32, #tpu.memory_space<vmem>>, vector<1x128xf32>
    %c1 = arith.constant 1 : index
    %c0_1 = arith.constant 0 : index
    %1 = vector.load %arg1[%c1, %c0_1] : memref<2x128xf32, #tpu.memory_space<vmem>>, vector<1x128xf32>
    %c0_2 = arith.constant 0 : index
    %c0_3 = arith.constant 0 : index
    %2 = vector.load %arg4[%c0_2, %c0_3] : memref<104x8xf32, #tpu.memory_space<vmem>>, vector<24x1xf32>
    %c0_4 = arith.constant 0 : index
    %c1_5 = arith.constant 1 : index
    %3 = vector.load %arg4[%c0_4, %c1_5] : memref<104x8xf32, #tpu.memory_space<vmem>>, vector<24x1xf32>
    %c0_6 = arith.constant 0 : index
    %c2 = arith.constant 2 : index
    %4 = vector.load %arg4[%c0_6, %c2] : memref<104x8xf32, #tpu.memory_space<vmem>>, vector<24x1xf32>
    %c0_7 = arith.constant 0 : index
    %c3 = arith.constant 3 : index
    %5 = vector.load %arg4[%c0_7, %c3] : memref<104x8xf32, #tpu.memory_space<vmem>>, vector<24x1xf32>
    %c0_8 = arith.constant 0 : index
    %c4 = arith.constant 4 : index
    %6 = vector.load %arg4[%c0_8, %c4] : memref<104x8xf32, #tpu.memory_space<vmem>>, vector<104x1xf32>
    %c0_9 = arith.constant 0 : index
    %c5 = arith.constant 5 : index
    %7 = vector.load %arg4[%c0_9, %c5] : memref<104x8xf32, #tpu.memory_space<vmem>>, vector<104x1xf32>
    %c0_10 = arith.constant 0 : index
    %c6 = arith.constant 6 : index
    %8 = vector.load %arg4[%c0_10, %c6] : memref<104x8xf32, #tpu.memory_space<vmem>>, vector<104x1xf32>
    %c0_11 = arith.constant 0 : index
    %c7 = arith.constant 7 : index
    %9 = vector.load %arg4[%c0_11, %c7] : memref<104x8xf32, #tpu.memory_space<vmem>>, vector<104x1xf32>
    %c0_12 = arith.constant 0 : index
    %c0_13 = arith.constant 0 : index
    %10 = vector.load %arg5[%c0_12, %c0_13] : memref<24x128xf32, #tpu.memory_space<vmem>>, vector<8x24xf32>
    %c8 = arith.constant 8 : index
    %c0_14 = arith.constant 0 : index
    %11 = vector.load %arg5[%c8, %c0_14] : memref<24x128xf32, #tpu.memory_space<vmem>>, vector<8x104xf32>
    %c16 = arith.constant 16 : index
    %c0_15 = arith.constant 0 : index
    %12 = vector.load %arg5[%c16, %c0_15] : memref<24x128xf32, #tpu.memory_space<vmem>>, vector<1x1xf32>
    %13 = vector.broadcast %2 : vector<24x1xf32> to vector<24x128xf32>
    %14 = vector.broadcast %0 : vector<1x128xf32> to vector<24x128xf32>
    %15 = arith.mulf %13, %14 : vector<24x128xf32>
    %16 = vector.broadcast %3 : vector<24x1xf32> to vector<24x128xf32>
    %17 = vector.broadcast %1 : vector<1x128xf32> to vector<24x128xf32>
    %18 = arith.mulf %16, %17 : vector<24x128xf32>
    %19 = arith.addf %15, %18 : vector<24x128xf32>
    %20 = vector.broadcast %4 : vector<24x1xf32> to vector<24x128xf32>
    %21 = arith.addf %19, %20 : vector<24x128xf32>
    %22 = math.tanh %21 : vector<24x128xf32>
    %c0_16 = arith.constant 0 : index
    %c0_17 = arith.constant 0 : index
    %23 = vector.load %arg2[%c0_16, %c0_17] : memref<24x24xf32, #tpu.memory_space<vmem>>, vector<24x24xf32>
    %cst = arith.constant dense<0.000000e+00> : vector<24x128xf32>
    %24 = tpu.matmul %23, %22, %cst {dimension_numbers = #tpu.dot_dimension_numbers<[1], [0], [0], [1], [0, 0, 1, 1], [], []>} : vector<24x24xf32>, vector<24x128xf32>, vector<24x128xf32> -> vector<24x128xf32>
    %25 = vector.broadcast %5 : vector<24x1xf32> to vector<24x128xf32>
    %26 = arith.addf %24, %25 : vector<24x128xf32>
    %27 = math.tanh %26 : vector<24x128xf32>
    %cst_18 = arith.constant dense<0.000000e+00> : vector<8x128xf32>
    %28 = tpu.matmul %10, %27, %cst_18 {dimension_numbers = #tpu.dot_dimension_numbers<[1], [0], [0], [1], [0, 0, 1, 1], [], []>} : vector<8x24xf32>, vector<24x128xf32>, vector<8x128xf32> -> vector<8x128xf32>
    %29 = vector.extract_strided_slice %28 {offsets = [0, 0], sizes = [1, 128], strides = [1, 1]} : vector<8x128xf32> to vector<1x128xf32>
    %30 = vector.broadcast %12 : vector<1x1xf32> to vector<1x128xf32>
    %31 = arith.addf %29, %30 : vector<1x128xf32>
    %32 = vector.broadcast %6 : vector<104x1xf32> to vector<104x128xf32>
    %33 = vector.broadcast %0 : vector<1x128xf32> to vector<104x128xf32>
    %34 = arith.mulf %32, %33 : vector<104x128xf32>
    %35 = vector.broadcast %7 : vector<104x1xf32> to vector<104x128xf32>
    %36 = vector.broadcast %31 : vector<1x128xf32> to vector<104x128xf32>
    %37 = arith.mulf %35, %36 : vector<104x128xf32>
    %38 = arith.addf %34, %37 : vector<104x128xf32>
    %39 = vector.broadcast %8 : vector<104x1xf32> to vector<104x128xf32>
    %40 = arith.addf %38, %39 : vector<104x128xf32>
    %41 = math.tanh %40 : vector<104x128xf32>
    %c0_19 = arith.constant 0 : index
    %c0_20 = arith.constant 0 : index
    %42 = vector.load %arg3[%c0_19, %c0_20] : memref<104x104xf32, #tpu.memory_space<vmem>>, vector<104x104xf32>
    %cst_21 = arith.constant dense<0.000000e+00> : vector<104x128xf32>
    %43 = tpu.matmul %42, %41, %cst_21 {dimension_numbers = #tpu.dot_dimension_numbers<[1], [0], [0], [1], [0, 0, 1, 1], [], []>} : vector<104x104xf32>, vector<104x128xf32>, vector<104x128xf32> -> vector<104x128xf32>
    %44 = vector.broadcast %9 : vector<104x1xf32> to vector<104x128xf32>
    %45 = arith.addf %43, %44 : vector<104x128xf32>
    %46 = math.tanh %45 : vector<104x128xf32>
    %cst_22 = arith.constant dense<0.000000e+00> : vector<8x128xf32>
    %47 = tpu.matmul %11, %46, %cst_22 {dimension_numbers = #tpu.dot_dimension_numbers<[1], [0], [0], [1], [0, 0, 1, 1], [], []>} : vector<8x104xf32>, vector<104x128xf32>, vector<8x128xf32> -> vector<8x128xf32>
    %48 = vector.extract_strided_slice %47 {offsets = [0, 0], sizes = [1, 128], strides = [1, 1]} : vector<8x128xf32> to vector<1x128xf32>
    %c0_23 = arith.constant 0 : index
    %c0_24 = arith.constant 0 : index
    %49 = vector.load %arg6[%c0_23, %c0_24] : memref<2x128xf32, #tpu.memory_space<vmem>>, vector<1x128xf32>
    tpu.vector_store %arg6[%c0_23, %c0_24], %48 {strides = array<i32>} : memref<2x128xf32, #tpu.memory_space<vmem>>, vector<1x128xf32>,
    %c1_25 = arith.constant 1 : index
    %c0_26 = arith.constant 0 : index
    %50 = vector.load %arg6[%c1_25, %c0_26] : memref<2x128xf32, #tpu.memory_space<vmem>>, vector<1x128xf32>
    tpu.vector_store %arg6[%c1_25, %c0_26], %31 {strides = array<i32>} : memref<2x128xf32, #tpu.memory_space<vmem>>, vector<1x128xf32>,
    return
  }
  func.func @transform_0(%arg0: i32) -> (i32, i32) {
    %c0_i32 = arith.constant 0 : i32
    %c0_i32_0 = arith.constant 0 : i32
    return %c0_i32, %arg0 : i32, i32
  }
  func.func @transform_1(%arg0: i32) -> (i32, i32) {
    %c0_i32 = arith.constant 0 : i32
    %c0_i32_0 = arith.constant 0 : i32
    %c0_i32_1 = arith.constant 0 : i32
    return %c0_i32, %c0_i32_0 : i32, i32
  }
  func.func @transform_2(%arg0: i32) -> (i32, i32) {
    %c0_i32 = arith.constant 0 : i32
    %c0_i32_0 = arith.constant 0 : i32
    %c0_i32_1 = arith.constant 0 : i32
    return %c0_i32, %c0_i32_0 : i32, i32
  }
  func.func @transform_3(%arg0: i32) -> (i32, i32) {
    %c0_i32 = arith.constant 0 : i32
    %c0_i32_0 = arith.constant 0 : i32
    %c0_i32_1 = arith.constant 0 : i32
    return %c0_i32, %c0_i32_0 : i32, i32
  }
  func.func @transform_4(%arg0: i32) -> (i32, i32) {
    %c0_i32 = arith.constant 0 : i32
    %c0_i32_0 = arith.constant 0 : i32
    %c0_i32_1 = arith.constant 0 : i32
    return %c0_i32, %c0_i32_0 : i32, i32
  }
  func.func @transform_5(%arg0: i32) -> (i32, i32) {
    %c0_i32 = arith.constant 0 : i32
    %c0_i32_0 = arith.constant 0 : i32
    return %c0_i32, %arg0 : i32, i32
  }
}

</mosaic_0001>

<llo_original>
// kernel: tpu_custom_call.1
$region0: #{tpu_custom_call.1}
  #allocation0 [shape = 'u32[]', space=smem, size = 0x4, offset = 0x4, fixed_abs, tag = 'smem constant byte address 0x4 - core index']
  #allocation1 [shape = 'u32[72,128]{1,0:T(1,128)}', space=vmem, size = 0x9000, scoped, tag = 'internal scratch']
  %s0 = inlined_call_operand.vmem [shape: f32[2,256], index: 0, kind: input, shape index: {}]
  %s1 = inlined_call_operand.hbm [shape: f32[24,24], index: 1, kind: input, shape index: {}]
  %s2 = inlined_call_operand.vmem [shape: f32[104,104], index: 2, kind: input, shape index: {}]
  %s3 = inlined_call_operand.vmem [shape: f32[104,8], index: 3, kind: input, shape index: {}]
  %s4 = inlined_call_operand.hbm [shape: f32[24,128], index: 4, kind: input, shape index: {}]
  %s5 = inlined_call_operand.hbm [shape: f32[2,256], index: 5, kind: output, shape index: {}]
  %s6 = sld [smem:[#allocation0]]
  $region61: #{tpu_custom_call.1} parent=0
    _
  %s8 = ssub.s32 1, %s6
  %s9 = scalar_select 0, %s8, %s6
  $region1: #{tpu_custom_call.1} parent=0
    #allocation2 [shape = 'u8[12288]{0}', space=vmem, size = 0x3000, scoped, tag = 'input window, operand 1, single buffered']
    #allocation3 [shape = 's32[2]{0}', space=sflag, size = 0x8, scoped, tag = 'scoped memory for tpu_custom_call.1']
    #allocation4 [shape = 's32[2]{0}', space=sflag, size = 0x8, scoped, tag = 'scoped memory for tpu_custom_call.1']
    #allocation5 [shape = 'u8[12288]{0}', space=vmem, size = 0x3000, scoped, tag = 'input window, operand 4, single buffered']
    #allocation6 [shape = 's32[1]{0}', space=sflag, size = 0x4, scoped, tag = 'scoped memory for tpu_custom_call.1']
    #allocation7 [shape = 'u8[2048]{0}', space=vmem, size = 0x800, scoped, tag = 'output window, operand 0']
    %10 = vsyncpa [#allocation3], 0
    %11 = vsyncpa [#allocation6], 0
    %12 = vsyncpa [#allocation4], 0
    %s13 = scalar_lea.sflag [#allocation4], 1
    %14 = vsyncpa %s13, 0
    loop: start=0, step=1, limit=4
    $region2: #{tpu_custom_call.1} parent=1 // loop_pre_header
      _
    $region3: #{tpu_custom_call.1} parent=1 // loop_header
      %s16 = sphi 0, %s20
      %p17 = scmp.ge.s32.totalorder %s16, 4
      %s26 = sphi 0, %s28
      %s29 = sphi 0, %s26
      %s30 = sphi 0, %s29
      %s46 = sphi 0, %s30
      %s50 = sphi 0, %s50
      %s52 = sphi 0, %s50
      %s53 = sphi 0, %s52
      %s67 = sphi 0, %s53
      %s71 = sphi 0, %s71
      %s73 = sphi 0, %s71
      %s74 = sphi 0, %s73
      %s88 = sphi 0, %s74
      %s92 = sphi 0, %s92
      %s94 = sphi 0, %s92
      %s95 = sphi 0, %s94
      %s109 = sphi 0, %s95
      %s113 = sphi 0, %s113
      %s115 = sphi 0, %s113
      %s116 = sphi 0, %s115
      %s130 = sphi 0, %s116
      %s136 = sphi 0, %s138
      %s139 = sphi 0, %s136
      %s140 = sphi 0, %s139
      %s156 = sphi 0, %s140
    $region4: #{tpu_custom_call.1} parent=1 // loop_header_branch
      %19 = sbr.rel (%p17) target = $region8
    $region5: #{tpu_custom_call.1} parent=1 // loop_body
      %s21 = ssub.s32 %s16, 1
      %s22 = ssub.s32 %s16, 2
      %s23 = sadd.s32 %s16, 1
      %s24 = ssub.s32 %s16, %s23
      %p25 = scmp.eq.s32.totalorder %s24, 0
      %s27 = sadd.s32 %s26, 1
      %s28 = scalar_select %p25, %s26, %s27
      %p31 = pneg %p25
      %p32 = scmp.eq.s32.totalorder %s16, 1
      %p33 = por %p31, %p32
      %p34 = scmp.ne.s32.totalorder %s26, %s29
      %p35 = scmp.eq.s32.totalorder %s16, 0
      %p36 = por %p34, %p35
      %p37 = scmp.ne.s32.totalorder %s26, %s29
      %p38 = scmp.eq.s32.totalorder %s21, 1
      %p39 = por %p37, %p38
      %p40 = scmp.ne.s32.totalorder %s29, %s30
      %p41 = scmp.eq.s32.totalorder %s21, 0
      %p42 = por %p40, %p41
      %p43 = scmp.ne.s32.totalorder %s29, %s30
      %p44 = scmp.eq.s32.totalorder %s22, 1
      %p45 = por %p43, %p44
      %p47 = scmp.ne.s32.totalorder %s30, %s46
      %p48 = scmp.eq.s32.totalorder %s22, 0
      %p49 = por %p47, %p48
      %s51 = sadd.s32 %s50, 1
      %p54 = scmp.eq.s32.totalorder %s16, 1
      %p55 = scmp.ne.s32.totalorder %s50, %s52
      %p56 = scmp.eq.s32.totalorder %s16, 0
      %p57 = por %p55, %p56
      %p58 = scmp.ne.s32.totalorder %s50, %s52
      %p59 = scmp.eq.s32.totalorder %s21, 1
      %p60 = por %p58, %p59
      %p61 = scmp.ne.s32.totalorder %s52, %s53
      %p62 = scmp.eq.s32.totalorder %s21, 0
      %p63 = por %p61, %p62
      %p64 = scmp.ne.s32.totalorder %s52, %s53
      %p65 = scmp.eq.s32.totalorder %s22, 1
      %p66 = por %p64, %p65
      %p68 = scmp.ne.s32.totalorder %s53, %s67
      %p69 = scmp.eq.s32.totalorder %s22, 0
      %p70 = por %p68, %p69
      %s72 = sadd.s32 %s71, 1
      %p75 = scmp.eq.s32.totalorder %s16, 1
      %p76 = scmp.ne.s32.totalorder %s71, %s73
      %p77 = scmp.eq.s32.totalorder %s16, 0
      %p78 = por %p76, %p77
      %p79 = scmp.ne.s32.totalorder %s71, %s73
      %p80 = scmp.eq.s32.totalorder %s21, 1
      %p81 = por %p79, %p80
      %p82 = scmp.ne.s32.totalorder %s73, %s74
      %p83 = scmp.eq.s32.totalorder %s21, 0
      %p84 = por %p82, %p83
      %p85 = scmp.ne.s32.totalorder %s73, %s74
      %p86 = scmp.eq.s32.totalorder %s22, 1
      %p87 = por %p85, %p86
      %p89 = scmp.ne.s32.totalorder %s74, %s88
      %p90 = scmp.eq.s32.totalorder %s22, 0
      %p91 = por %p89, %p90
      %s93 = sadd.s32 %s92, 1
      %p96 = scmp.eq.s32.totalorder %s16, 1
      %p97 = scmp.ne.s32.totalorder %s92, %s94
      %p98 = scmp.eq.s32.totalorder %s16, 0
      %p99 = por %p97, %p98
      %p100 = scmp.ne.s32.totalorder %s92, %s94
      %p101 = scmp.eq.s32.totalorder %s21, 1
      %p102 = por %p100, %p101
      %p103 = scmp.ne.s32.totalorder %s94, %s95
      %p104 = scmp.eq.s32.totalorder %s21, 0
      %p105 = por %p103, %p104
      %p106 = scmp.ne.s32.totalorder %s94, %s95
      %p107 = scmp.eq.s32.totalorder %s22, 1
      %p108 = por %p106, %p107
      %p110 = scmp.ne.s32.totalorder %s95, %s109
      %p111 = scmp.eq.s32.totalorder %s22, 0
      %p112 = por %p110, %p111
      %s114 = sadd.s32 %s113, 1
      %p117 = scmp.eq.s32.totalorder %s16, 1
      %p118 = scmp.ne.s32.totalorder %s113, %s115
      %p119 = scmp.eq.s32.totalorder %s16, 0
      %p120 = por %p118, %p119
      %p121 = scmp.ne.s32.totalorder %s113, %s115
      %p122 = scmp.eq.s32.totalorder %s21, 1
      %p123 = por %p121, %p122
      %p124 = scmp.ne.s32.totalorder %s115, %s116
      %p125 = scmp.eq.s32.totalorder %s21, 0
      %p126 = por %p124, %p125
      %p127 = scmp.ne.s32.totalorder %s115, %s116
      %p128 = scmp.eq.s32.totalorder %s22, 1
      %p129 = por %p127, %p128
      %p131 = scmp.ne.s32.totalorder %s116, %s130
      %p132 = scmp.eq.s32.totalorder %s22, 0
      %p133 = por %p131, %p132
      %s134 = ssub.s32 %s16, %s23
      %p135 = scmp.eq.s32.totalorder %s134, 0
      %s137 = sadd.s32 %s136, 1
      %s138 = scalar_select %p135, %s136, %s137
      %p141 = pneg %p135
      %p142 = scmp.eq.s32.totalorder %s16, 1
      %p143 = por %p141, %p142
      %p144 = scmp.ne.s32.totalorder %s136, %s139
      %p145 = scmp.eq.s32.totalorder %s16, 0
      %p146 = por %p144, %p145
      %p147 = scmp.ne.s32.totalorder %s136, %s139
      %p148 = scmp.eq.s32.totalorder %s21, 1
      %p149 = por %p147, %p148
      %p150 = scmp.ne.s32.totalorder %s139, %s140
      %p151 = scmp.eq.s32.totalorder %s21, 0
      %p152 = por %p150, %p151
      %p153 = scmp.ne.s32.totalorder %s139, %s140
      %p154 = scmp.eq.s32.totalorder %s22, 1
      %p155 = por %p153, %p154
      %p157 = scmp.ne.s32.totalorder %s140, %s156
      %p158 = scmp.eq.s32.totalorder %s22, 0
      %p159 = por %p157, %p158
      %p160 = scmp.le.s32.totalorder 1, %s16
      %p161 = scmp.lt.s32.totalorder %s16, 3
      %p162 = pnand %p160, %p161
      %p163 = pneg %p162
      // Predicated region
      $region9: #{tpu_custom_call.1} parent=5 // pred_check
        _
      $region10: #{tpu_custom_call.1} parent=5 // pred_check_branch
        %165 = sbr.rel (%p162) target = $region12
      $region11: #{tpu_custom_call.1} parent=5 // pred_region
        %s166 = ssub.s32 %s16, 1
        // Predicated region
        $region13: #{tpu_custom_call.1} parent=11 // pred_check
          %p167 = pneg %p63
        $region14: #{tpu_custom_call.1} parent=11 // pred_check_branch
          %169 = sbr.rel (%p167) target = $region16
        $region15: #{tpu_custom_call.1} parent=11 // pred_region
          %171 = vsyncadd [#allocation3], 0
          %s172 = sshll.u32 %s1, 4
          %s173 = int_to_ptr.hbm [resolvable:$true] %s172
          %s174 = sshll.u32 [#allocation2], 4
          %s175 = int_to_ptr.vmem [resolvable:$true] %s174
          %180 = dma.hbm_to_vmem [thread:$0]  %s173, 384, %s175, [#allocation3], 128, 128, 8
        $region16: #{tpu_custom_call.1} parent=11 // pred_fallthru
          _
        // Predicated region
        $region17: #{tpu_custom_call.1} parent=11 // pred_check
          %p181 = pneg %p84
        $region18: #{tpu_custom_call.1} parent=11 // pred_check_branch
          %183 = sbr.rel (%p181) target = $region20
        $region19: #{tpu_custom_call.1} parent=11 // pred_region
          _
        $region20: #{tpu_custom_call.1} parent=11 // pred_fallthru
          _
        // Predicated region
        $region21: #{tpu_custom_call.1} parent=11 // pred_check
          %p184 = pneg %p105
        $region22: #{tpu_custom_call.1} parent=11 // pred_check_branch
          %186 = sbr.rel (%p184) target = $region24
        $region23: #{tpu_custom_call.1} parent=11 // pred_region
          _
        $region24: #{tpu_custom_call.1} parent=11 // pred_fallthru
          _
        // Predicated region
        $region25: #{tpu_custom_call.1} parent=11 // pred_check
          %p187 = pneg %p126
        $region26: #{tpu_custom_call.1} parent=11 // pred_check_branch
          %189 = sbr.rel (%p187) target = $region28
        $region27: #{tpu_custom_call.1} parent=11 // pred_region
          %191 = vsyncadd [#allocation6], 0
          %s192 = sshll.u32 %s4, 4
          %s193 = int_to_ptr.hbm [resolvable:$true] %s192
          %s194 = sshll.u32 [#allocation5], 4
          %s195 = int_to_ptr.vmem [resolvable:$true] %s194
          %200 = dma.hbm_to_vmem [thread:$0]  %s193, 384, %s195, [#allocation6], 128, 128, 8
        $region28: #{tpu_custom_call.1} parent=11 // pred_fallthru
          _
      $region12: #{tpu_custom_call.1} parent=5 // pred_fallthru
        _
      %p201 = scmp.lt.s32.totalorder %s16, 2
      // Predicated region
      $region29: #{tpu_custom_call.1} parent=5 // pred_check
        %p202 = pneg %p201
      $region30: #{tpu_custom_call.1} parent=5 // pred_check_branch
        %204 = sbr.rel (%p202) target = $region32
      $region31: #{tpu_custom_call.1} parent=5 // pred_region
        // Predicated region
        $region33: #{tpu_custom_call.1} parent=31 // pred_check
          %p205 = pneg %p36
        $region34: #{tpu_custom_call.1} parent=31 // pred_check_branch
          %207 = sbr.rel (%p205) target = $region36
        $region35: #{tpu_custom_call.1} parent=31 // pred_region
          %p208 = scmp.lt.s32.totalorder %s16, 1
          %s209 = scalar_select %p208, %s16, 1
          %s210 = smul.addr %s209, 2
          %s211 = scalar_lea.vmem %s0, %s210
        $region36: #{tpu_custom_call.1} parent=31 // pred_fallthru
          _
      $region32: #{tpu_custom_call.1} parent=5 // pred_fallthru
        _
      %p212 = scmp.le.s32.totalorder 1, %s16
      %p213 = scmp.lt.s32.totalorder %s16, 3
      %p214 = pnand %p212, %p213
      %p215 = pneg %p214
      // Predicated region
      $region37: #{tpu_custom_call.1} parent=5 // pred_check
        _
      $region38: #{tpu_custom_call.1} parent=5 // pred_check_branch
        %217 = sbr.rel (%p214) target = $region40
      $region39: #{tpu_custom_call.1} parent=5 // pred_region
        %s218 = ssub.s32 %s16, 1
        // Predicated region
        $region41: #{tpu_custom_call.1} parent=39 // pred_check
          %p219 = pneg %p63
        $region42: #{tpu_custom_call.1} parent=39 // pred_check_branch
          %221 = sbr.rel (%p219) target = $region44
        $region43: #{tpu_custom_call.1} parent=39 // pred_region
          %223 = dma.done [#allocation3], 384
        $region44: #{tpu_custom_call.1} parent=39 // pred_fallthru
          _
        // Predicated region
        $region45: #{tpu_custom_call.1} parent=39 // pred_check
          %p224 = pneg %p126
        $region46: #{tpu_custom_call.1} parent=39 // pred_check_branch
          %226 = sbr.rel (%p224) target = $region48
        $region47: #{tpu_custom_call.1} parent=39 // pred_region
          %228 = dma.done [#allocation6], 384
        $region48: #{tpu_custom_call.1} parent=39 // pred_fallthru
          _
        %p229 = scmp.lt.s32.totalorder %s21, 1
        %s230 = scalar_select %p229, %s21, 1
        %s231 = smul.addr %s230, 2
        %s232 = scalar_lea.vmem %s0, %s231
        %p233 = pneg %p42
        %p234 = pneg %p39
        %p235 = pneg %p63
        %p236 = pneg %p60
        %p237 = pneg %p84
        %p238 = pneg %p81
        %p239 = pneg %p105
        %p240 = pneg %p102
        %p241 = pneg %p126
        %p242 = pneg %p123
        %p243 = pneg %p152
        %p244 = pneg %p149
        %s245 = sand.u32 %s139, 1
        %s246 = scalar_lea.sflag [#allocation4], %s245
        %s247 = sand.u32 %s139, 1
        %s248 = smul.addr %s247, 2
        %s249 = scalar_lea.vmem [#allocation7], %s248
        %p250 = scmp.lt.s32.totalorder %s21, 1
        %s251 = scalar_select %p250, %s21, 1
        %s252 = smul.addr %s251, 2
        %s253 = scalar_lea.vmem %s0, %s252
        %v254 = vld [vmem:[%s253] sm:$0x1]
        %v255 = vld [vmem:[%s253 + $0x1] sm:$0x1]
        %v256 = vld [vmem:[%s3] sm:$0xff]
        %v257 = vld [vmem:[%s3 + $0x8] sm:$0xff]
        %v258 = vld [vmem:[%s3 + $0x10] sm:$0xff]
        %v259 = vld [vmem:[%s3 + $0x18] sm:$0xff]
        %v260 = vld [vmem:[%s3 + $0x20] sm:$0xff]
        %v261 = vld [vmem:[%s3 + $0x28] sm:$0xff]
        %v262 = vld [vmem:[%s3 + $0x30] sm:$0xff]
        %v263 = vld [vmem:[%s3 + $0x38] sm:$0xff]
        %v264 = vld [vmem:[%s3 + $0x40] sm:$0xff]
        %v265 = vld [vmem:[%s3 + $0x48] sm:$0xff]
        %v266 = vld [vmem:[%s3 + $0x50] sm:$0xff]
        %v267 = vld [vmem:[%s3 + $0x58] sm:$0xff]
        %v268 = vld [vmem:[%s3 + $0x60] sm:$0xff]
        %v269 = vld [vmem:[#allocation5] sm:$0xff]
        %v270 = vld [vmem:[#allocation5 + $0x8] sm:$0xff]
        %v271 = vld [vmem:[#allocation5 + $0x10] sm:$0x1]
        %273 = vset.pattern.permute.xlu0 0
        %274 = vperm.xlu0 %273, %v256
        %v275 = vpop.permute.xlu0 %274
        %278 = vset.pattern.permute.xlu0 0
        %279 = vperm.xlu0 %278, %v257
        %v280 = vpop.permute.xlu0 %279
        %283 = vset.pattern.permute.xlu0 0
        %284 = vperm.xlu0 %283, %v258
        %v285 = vpop.permute.xlu0 %284
        %v287 = vperm.slane %v254, 0
        %v288 = vmul.f32 %v275, %v287
        %v289 = vmul.f32 %v280, %v287
        %v290 = vmul.f32 %v285, %v287
        %291 = vset.pattern.permute.xlu0 1
        %292 = vperm.xlu0 %291, %v256
        %v293 = vpop.permute.xlu0 %292
        %295 = vset.pattern.permute.xlu0 1
        %296 = vperm.xlu0 %295, %v257
        %v297 = vpop.permute.xlu0 %296
        %299 = vset.pattern.permute.xlu0 1
        %300 = vperm.xlu0 %299, %v258
        %v301 = vpop.permute.xlu0 %300
        %v303 = vperm.slane %v255, 0
        %v304 = vmul.f32 %v293, %v303
        %v305 = vmul.f32 %v297, %v303
        %v306 = vmul.f32 %v301, %v303
        %v307 = vadd.f32 %v288, %v304
        %v308 = vadd.f32 %v289, %v305
        %v309 = vadd.f32 %v290, %v306
        %310 = vset.pattern.permute.xlu0 2
        %311 = vperm.xlu0 %310, %v256
        %v312 = vpop.permute.xlu0 %311
        %314 = vset.pattern.permute.xlu0 2
        %315 = vperm.xlu0 %314, %v257
        %v316 = vpop.permute.xlu0 %315
        %318 = vset.pattern.permute.xlu0 2
        %319 = vperm.xlu0 %318, %v258
        %v320 = vpop.permute.xlu0 %319
        %v322 = vadd.f32 %v307, %v312
        %v323 = vadd.f32 %v308, %v316
        %v324 = vadd.f32 %v309, %v320
        %v325 = vtanh.pop %v322
        %v326 = vtanh.pop %v323
        %v327 = vtanh.pop %v324
        %v328 = vld [vmem:[#allocation2] sm:$0xff]
        %v329 = vld [vmem:[#allocation2 + $0x8] sm:$0xff]
        %v330 = vld [vmem:[#allocation2 + $0x10] sm:$0xff]
        %331 = vset.pattern.permute.xlu0 3
        %332 = vperm.xlu0 %331, %v256
        %v333 = vpop.permute.xlu0 %332
        %335 = vset.pattern.permute.xlu0 3
        %336 = vperm.xlu0 %335, %v257
        %v337 = vpop.permute.xlu0 %336
        %339 = vset.pattern.permute.xlu0 3
        %340 = vperm.xlu0 %339, %v258
        %v341 = vpop.permute.xlu0 %340
        %vm343 = vcmask 195584
        %v345 = vsel %vm343, %v328, 0
        %v348 = vsel %vm343, %v329, 0
        %v351 = vsel %vm343, %v330, 0
        %353 = vmatpush.msra.mxu0 0.0
        %354 = vmatpush.msra.mxu0 0.0
        %355 = vmatpush.msra.mxu0 0.0
        %356 = vmatpush.msra.mxu0 0.0
        %357 = vmatpush.msra.mxu0 0.0
        %358 = vmatpush.msra.mxu0 0.0
        %359 = vmatpush.msra.mxu0 0.0
        %360 = vmatpush.msra.mxu0 0.0
        %361 = vmatpush.msra.mxu0 0.0
        %362 = vmatpush.msra.mxu0 0.0
        %363 = vmatpush.msra.mxu0 0.0
        %364 = vmatpush.msra.mxu0 0.0
        %365 = vmatpush.msra.mxu0 0.0
        %366 = vmatpush.msra.mxu0 %v327
        %367 = vmatpush.msra.mxu0 %v326
        %368 = vmatpush.msra.mxu0 %v325
        %369 = vmatmul.f32.gmra.mxu0 %v345
        %v370 = vpop.f32.mrf.mxu0
        %v371 = vadd.f32 %v333, %v370
        %372 = vmatmul.f32.gmra.mxu0 %v348
        %v373 = vpop.f32.mrf.mxu0
        %v374 = vadd.f32 %v337, %v373
        %375 = vmatmul.f32.gmra.mxu0 %v351
        %v376 = vpop.f32.mrf.mxu0
        %v377 = vadd.f32 %v341, %v376
        %378 = vdwg.mxu0
        %v379 = vtanh.pop %v371
        %v380 = vtanh.pop %v374
        %v381 = vtanh.pop %v377
        %v383 = vsel %vm343, %v269, 0
        %385 = vmatpush.msra.mxu0 0.0
        %386 = vmatpush.msra.mxu0 0.0
        %387 = vmatpush.msra.mxu0 0.0
        %388 = vmatpush.msra.mxu0 0.0
        %389 = vmatpush.msra.mxu0 0.0
        %390 = vmatpush.msra.mxu0 0.0
        %391 = vmatpush.msra.mxu0 0.0
        %392 = vmatpush.msra.mxu0 0.0
        %393 = vmatpush.msra.mxu0 0.0
        %394 = vmatpush.msra.mxu0 0.0
        %395 = vmatpush.msra.mxu0 0.0
        %396 = vmatpush.msra.mxu0 0.0
        %397 = vmatpush.msra.mxu0 0.0
        %398 = vmatpush.msra.mxu0 %v381
        %399 = vmatpush.msra.mxu0 %v380
        %400 = vmatpush.msra.mxu0 %v379
        %401 = vmatmul.f32.gmra.mxu0 %v383
        %v402 = vpop.f32.mrf.mxu0
        %v403 = vadd.f32 0.0, %v402
        %404 = vdwg.mxu0
        %406 = vset.pattern.permute.xlu0 0
        %407 = vperm.xlu0 %406, %v271
        %v408 = vpop.permute.xlu0 %407
        %v410 = vadd.f32 %v403, %v408
        %411 = vset.pattern.permute.xlu0 4
        %412 = vperm.xlu0 %411, %v256
        %v413 = vpop.permute.xlu0 %412
        %415 = vset.pattern.permute.xlu0 4
        %416 = vperm.xlu0 %415, %v257
        %v417 = vpop.permute.xlu0 %416
        %419 = vset.pattern.permute.xlu0 4
        %420 = vperm.xlu0 %419, %v258
        %v421 = vpop.permute.xlu0 %420
        %424 = vset.pattern.permute.xlu0 4
        %425 = vperm.xlu0 %424, %v259
        %v426 = vpop.permute.xlu0 %425
        %429 = vset.pattern.permute.xlu0 4
        %430 = vperm.xlu0 %429, %v260
        %v431 = vpop.permute.xlu0 %430
        %434 = vset.pattern.permute.xlu0 4
        %435 = vperm.xlu0 %434, %v261
        %v436 = vpop.permute.xlu0 %435
        %439 = vset.pattern.permute.xlu0 4
        %440 = vperm.xlu0 %439, %v262
        %v441 = vpop.permute.xlu0 %440
        %444 = vset.pattern.permute.xlu0 4
        %445 = vperm.xlu0 %444, %v263
        %v446 = vpop.permute.xlu0 %445
        %449 = vset.pattern.permute.xlu0 4
        %450 = vperm.xlu0 %449, %v264
        %v451 = vpop.permute.xlu0 %450
        %454 = vset.pattern.permute.xlu0 4
        %455 = vperm.xlu0 %454, %v265
        %v456 = vpop.permute.xlu0 %455
        %459 = vset.pattern.permute.xlu0 4
        %460 = vperm.xlu0 %459, %v266
        %v461 = vpop.permute.xlu0 %460
        %464 = vset.pattern.permute.xlu0 4
        %465 = vperm.xlu0 %464, %v267
        %v466 = vpop.permute.xlu0 %465
        %469 = vset.pattern.permute.xlu0 4
        %470 = vperm.xlu0 %469, %v268
        %v471 = vpop.permute.xlu0 %470
        %v473 = vmul.f32 %v413, %v287
        %v474 = vmul.f32 %v417, %v287
        %v475 = vmul.f32 %v421, %v287
        %v476 = vmul.f32 %v426, %v287
        %v477 = vmul.f32 %v431, %v287
        %v478 = vmul.f32 %v436, %v287
        %v479 = vmul.f32 %v441, %v287
        %v480 = vmul.f32 %v446, %v287
        %v481 = vmul.f32 %v451, %v287
        %v482 = vmul.f32 %v456, %v287
        %v483 = vmul.f32 %v461, %v287
        %v484 = vmul.f32 %v466, %v287
        %v485 = vmul.f32 %v471, %v287
        %486 = vset.pattern.permute.xlu0 5
        %487 = vperm.xlu0 %486, %v256
        %v488 = vpop.permute.xlu0 %487
        %490 = vset.pattern.permute.xlu0 5
        %491 = vperm.xlu0 %490, %v257
        %v492 = vpop.permute.xlu0 %491
        %494 = vset.pattern.permute.xlu0 5
        %495 = vperm.xlu0 %494, %v258
        %v496 = vpop.permute.xlu0 %495
        %498 = vset.pattern.permute.xlu0 5
        %499 = vperm.xlu0 %498, %v259
        %v500 = vpop.permute.xlu0 %499
        %502 = vset.pattern.permute.xlu0 5
        %503 = vperm.xlu0 %502, %v260
        %v504 = vpop.permute.xlu0 %503
        %506 = vset.pattern.permute.xlu0 5
        %507 = vperm.xlu0 %506, %v261
        %v508 = vpop.permute.xlu0 %507
        %510 = vset.pattern.permute.xlu0 5
        %511 = vperm.xlu0 %510, %v262
        %v512 = vpop.permute.xlu0 %511
        %514 = vset.pattern.permute.xlu0 5
        %515 = vperm.xlu0 %514, %v263
        %v516 = vpop.permute.xlu0 %515
        %518 = vset.pattern.permute.xlu0 5
        %519 = vperm.xlu0 %518, %v264
        %v520 = vpop.permute.xlu0 %519
        %522 = vset.pattern.permute.xlu0 5
        %523 = vperm.xlu0 %522, %v265
        %v524 = vpop.permute.xlu0 %523
        %526 = vset.pattern.permute.xlu0 5
        %527 = vperm.xlu0 %526, %v266
        %v528 = vpop.permute.xlu0 %527
        %530 = vset.pattern.permute.xlu0 5
        %531 = vperm.xlu0 %530, %v267
        %v532 = vpop.permute.xlu0 %531
        %534 = vset.pattern.permute.xlu0 5
        %535 = vperm.xlu0 %534, %v268
        %v536 = vpop.permute.xlu0 %535
        %v538 = vperm.slane %v410, 0
        %v539 = vmul.f32 %v488, %v538
        %v540 = vmul.f32 %v492, %v538
        %v541 = vmul.f32 %v496, %v538
        %v542 = vmul.f32 %v500, %v538
        %v543 = vmul.f32 %v504, %v538
        %v544 = vmul.f32 %v508, %v538
        %v545 = vmul.f32 %v512, %v538
        %v546 = vmul.f32 %v516, %v538
        %v547 = vmul.f32 %v520, %v538
        %v548 = vmul.f32 %v524, %v538
        %v549 = vmul.f32 %v528, %v538
        %v550 = vmul.f32 %v532, %v538
        %v551 = vmul.f32 %v536, %v538
        %v552 = vadd.f32 %v473, %v539
        %v553 = vadd.f32 %v474, %v540
        %v554 = vadd.f32 %v475, %v541
        %v555 = vadd.f32 %v476, %v542
        %v556 = vadd.f32 %v477, %v543
        %v557 = vadd.f32 %v478, %v544
        %v558 = vadd.f32 %v479, %v545
        %v559 = vadd.f32 %v480, %v546
        %v560 = vadd.f32 %v481, %v547
        %v561 = vadd.f32 %v482, %v548
        %v562 = vadd.f32 %v483, %v549
        %v563 = vadd.f32 %v484, %v550
        %v564 = vadd.f32 %v485, %v551
        %565 = vset.pattern.permute.xlu0 6
        %566 = vperm.xlu0 %565, %v256
        %v567 = vpop.permute.xlu0 %566
        %569 = vset.pattern.permute.xlu0 6
        %570 = vperm.xlu0 %569, %v257
        %v571 = vpop.permute.xlu0 %570
        %573 = vset.pattern.permute.xlu0 6
        %574 = vperm.xlu0 %573, %v258
        %v575 = vpop.permute.xlu0 %574
        %577 = vset.pattern.permute.xlu0 6
        %578 = vperm.xlu0 %577, %v259
        %v579 = vpop.permute.xlu0 %578
        %581 = vset.pattern.permute.xlu0 6
        %582 = vperm.xlu0 %581, %v260
        %v583 = vpop.permute.xlu0 %582
        %585 = vset.pattern.permute.xlu0 6
        %586 = vperm.xlu0 %585, %v261
        %v587 = vpop.permute.xlu0 %586
        %589 = vset.pattern.permute.xlu0 6
        %590 = vperm.xlu0 %589, %v262
        %v591 = vpop.permute.xlu0 %590
        %593 = vset.pattern.permute.xlu0 6
        %594 = vperm.xlu0 %593, %v263
        %v595 = vpop.permute.xlu0 %594
        %597 = vset.pattern.permute.xlu0 6
        %598 = vperm.xlu0 %597, %v264
        %v599 = vpop.permute.xlu0 %598
        %601 = vset.pattern.permute.xlu0 6
        %602 = vperm.xlu0 %601, %v265
        %v603 = vpop.permute.xlu0 %602
        %605 = vset.pattern.permute.xlu0 6
        %606 = vperm.xlu0 %605, %v266
        %v607 = vpop.permute.xlu0 %606
        %609 = vset.pattern.permute.xlu0 6
        %610 = vperm.xlu0 %609, %v267
        %v611 = vpop.permute.xlu0 %610
        %613 = vset.pattern.permute.xlu0 6
        %614 = vperm.xlu0 %613, %v268
        %v615 = vpop.permute.xlu0 %614
        %v617 = vadd.f32 %v552, %v567
        %v618 = vadd.f32 %v553, %v571
        %v619 = vadd.f32 %v554, %v575
        %v620 = vadd.f32 %v555, %v579
        %v621 = vadd.f32 %v556, %v583
        %v622 = vadd.f32 %v557, %v587
        %v623 = vadd.f32 %v558, %v591
        %v624 = vadd.f32 %v559, %v595
        %v625 = vadd.f32 %v560, %v599
        %v626 = vadd.f32 %v561, %v603
        %v627 = vadd.f32 %v562, %v607
        %v628 = vadd.f32 %v563, %v611
        %v629 = vadd.f32 %v564, %v615
        %v630 = vtanh.pop %v617
        %v631 = vtanh.pop %v618
        %v632 = vtanh.pop %v619
        %v633 = vtanh.pop %v620
        %v634 = vtanh.pop %v621
        %v635 = vtanh.pop %v622
        %v636 = vtanh.pop %v623
        %v637 = vtanh.pop %v624
        %v638 = vtanh.pop %v625
        %v639 = vtanh.pop %v626
        %v640 = vtanh.pop %v627
        %v641 = vtanh.pop %v628
        %v642 = vtanh.pop %v629
        %v643 = vld [vmem:[%s2] sm:$0xff]
        %v644 = vld [vmem:[%s2 + $0x8] sm:$0xff]
        %v645 = vld [vmem:[%s2 + $0x10] sm:$0xff]
        %v646 = vld [vmem:[%s2 + $0x18] sm:$0xff]
        %v647 = vld [vmem:[%s2 + $0x20] sm:$0xff]
        %v648 = vld [vmem:[%s2 + $0x28] sm:$0xff]
        %v649 = vld [vmem:[%s2 + $0x30] sm:$0xff]
        %v650 = vld [vmem:[%s2 + $0x38] sm:$0xff]
        %v651 = vld [vmem:[%s2 + $0x40] sm:$0xff]
        %v652 = vld [vmem:[%s2 + $0x48] sm:$0xff]
        %v653 = vld [vmem:[%s2 + $0x50] sm:$0xff]
        %v654 = vld [vmem:[%s2 + $0x58] sm:$0xff]
        %v655 = vld [vmem:[%s2 + $0x60] sm:$0xff]
        %656 = vset.pattern.permute.xlu0 7
        %657 = vperm.xlu0 %656, %v256
        %v658 = vpop.permute.xlu0 %657
        %660 = vset.pattern.permute.xlu0 7
        %661 = vperm.xlu0 %660, %v257
        %v662 = vpop.permute.xlu0 %661
        %664 = vset.pattern.permute.xlu0 7
        %665 = vperm.xlu0 %664, %v258
        %v666 = vpop.permute.xlu0 %665
        %668 = vset.pattern.permute.xlu0 7
        %669 = vperm.xlu0 %668, %v259
        %v670 = vpop.permute.xlu0 %669
        %672 = vset.pattern.permute.xlu0 7
        %673 = vperm.xlu0 %672, %v260
        %v674 = vpop.permute.xlu0 %673
        %676 = vset.pattern.permute.xlu0 7
        %677 = vperm.xlu0 %676, %v261
        %v678 = vpop.permute.xlu0 %677
        %680 = vset.pattern.permute.xlu0 7
        %681 = vperm.xlu0 %680, %v262
        %v682 = vpop.permute.xlu0 %681
        %684 = vset.pattern.permute.xlu0 7
        %685 = vperm.xlu0 %684, %v263
        %v686 = vpop.permute.xlu0 %685
        %688 = vset.pattern.permute.xlu0 7
        %689 = vperm.xlu0 %688, %v264
        %v690 = vpop.permute.xlu0 %689
        %692 = vset.pattern.permute.xlu0 7
        %693 = vperm.xlu0 %692, %v265
        %v694 = vpop.permute.xlu0 %693
        %696 = vset.pattern.permute.xlu0 7
        %697 = vperm.xlu0 %696, %v266
        %v698 = vpop.permute.xlu0 %697
        %700 = vset.pattern.permute.xlu0 7
        %701 = vperm.xlu0 %700, %v267
        %v702 = vpop.permute.xlu0 %701
        %704 = vset.pattern.permute.xlu0 7
        %705 = vperm.xlu0 %704, %v268
        %v706 = vpop.permute.xlu0 %705
        %vm708 = vcmask 850944
        %v710 = vsel %vm708, %v643, 0
        %v713 = vsel %vm708, %v644, 0
        %v716 = vsel %vm708, %v645, 0
        %v719 = vsel %vm708, %v646, 0
        %v722 = vsel %vm708, %v647, 0
        %v725 = vsel %vm708, %v648, 0
        %v728 = vsel %vm708, %v649, 0
        %v731 = vsel %vm708, %v650, 0
        %v734 = vsel %vm708, %v651, 0
        %v737 = vsel %vm708, %v652, 0
        %v740 = vsel %vm708, %v653, 0
        %v743 = vsel %vm708, %v654, 0
        %v746 = vsel %vm708, %v655, 0
        %748 = vmatpush.msra.mxu0 0.0
        %749 = vmatpush.msra.mxu0 0.0
        %750 = vmatpush.msra.mxu0 0.0
        %751 = vmatpush.msra.mxu0 %v642
        %752 = vmatpush.msra.mxu0 %v641
        %753 = vmatpush.msra.mxu0 %v640
        %754 = vmatpush.msra.mxu0 %v639
        %755 = vmatpush.msra.mxu0 %v638
        %756 = vmatpush.msra.mxu0 %v637
        %757 = vmatpush.msra.mxu0 %v636
        %758 = vmatpush.msra.mxu0 %v635
        %759 = vmatpush.msra.mxu0 %v634
        %760 = vmatpush.msra.mxu0 %v633
        %761 = vmatpush.msra.mxu0 %v632
        %762 = vmatpush.msra.mxu0 %v631
        %763 = vmatpush.msra.mxu0 %v630
        %764 = vmatmul.f32.gmra.mxu0 %v710
        %v765 = vpop.f32.mrf.mxu0
        %v766 = vadd.f32 %v658, %v765
        %767 = vmatmul.f32.gmra.mxu0 %v713
        %v768 = vpop.f32.mrf.mxu0
        %v769 = vadd.f32 %v662, %v768
        %770 = vmatmul.f32.gmra.mxu0 %v716
        %v771 = vpop.f32.mrf.mxu0
        %v772 = vadd.f32 %v666, %v771
        %773 = vmatmul.f32.gmra.mxu0 %v719
        %v774 = vpop.f32.mrf.mxu0
        %v775 = vadd.f32 %v670, %v774
        %776 = vmatmul.f32.gmra.mxu0 %v722
        %v777 = vpop.f32.mrf.mxu0
        %v778 = vadd.f32 %v674, %v777
        %779 = vmatmul.f32.gmra.mxu0 %v725
        %v780 = vpop.f32.mrf.mxu0
        %v781 = vadd.f32 %v678, %v780
        %782 = vmatmul.f32.gmra.mxu0 %v728
        %v783 = vpop.f32.mrf.mxu0
        %v784 = vadd.f32 %v682, %v783
        %785 = vmatmul.f32.gmra.mxu0 %v731
        %v786 = vpop.f32.mrf.mxu0
        %v787 = vadd.f32 %v686, %v786
        %788 = vmatmul.f32.gmra.mxu0 %v734
        %v789 = vpop.f32.mrf.mxu0
        %v790 = vadd.f32 %v690, %v789
        %791 = vmatmul.f32.gmra.mxu0 %v737
        %v792 = vpop.f32.mrf.mxu0
        %v793 = vadd.f32 %v694, %v792
        %794 = vmatmul.f32.gmra.mxu0 %v740
        %v795 = vpop.f32.mrf.mxu0
        %v796 = vadd.f32 %v698, %v795
        %797 = vmatmul.f32.gmra.mxu0 %v743
        %v798 = vpop.f32.mrf.mxu0
        %v799 = vadd.f32 %v702, %v798
        %800 = vmatmul.f32.gmra.mxu0 %v746
        %v801 = vpop.f32.mrf.mxu0
        %v802 = vadd.f32 %v706, %v801
        %803 = vdwg.mxu0
        %v804 = vtanh.pop %v766
        %v805 = vtanh.pop %v769
        %v806 = vtanh.pop %v772
        %v807 = vtanh.pop %v775
        %v808 = vtanh.pop %v778
        %v809 = vtanh.pop %v781
        %v810 = vtanh.pop %v784
        %v811 = vtanh.pop %v787
        %v812 = vtanh.pop %v790
        %v813 = vtanh.pop %v793
        %v814 = vtanh.pop %v796
        %v815 = vtanh.pop %v799
        %v816 = vtanh.pop %v802
        %v818 = vsel %vm708, %v270, 0
        %820 = vmatpush.msra.mxu0 0.0
        %821 = vmatpush.msra.mxu0 0.0
        %822 = vmatpush.msra.mxu0 0.0
        %823 = vmatpush.msra.mxu0 %v816
        %824 = vmatpush.msra.mxu0 %v815
        %825 = vmatpush.msra.mxu0 %v814
        %826 = vmatpush.msra.mxu0 %v813
        %827 = vmatpush.msra.mxu0 %v812
        %828 = vmatpush.msra.mxu0 %v811
        %829 = vmatpush.msra.mxu0 %v810
        %830 = vmatpush.msra.mxu0 %v809
        %831 = vmatpush.msra.mxu0 %v808
        %832 = vmatpush.msra.mxu0 %v807
        %833 = vmatpush.msra.mxu0 %v806
        %834 = vmatpush.msra.mxu0 %v805
        %835 = vmatpush.msra.mxu0 %v804
        %836 = vmatmul.f32.gmra.mxu0 %v818
        %v837 = vpop.f32.mrf.mxu0
        %v838 = vadd.f32 0.0, %v837
        %839 = vdwg.mxu0
        %840 = vst [vmem:[%s249] sm:$0x1] %v838
        %841 = vst [vmem:[%s249 + $0x1] sm:$0x1] %v410
        %s842 = sand.u32 %s139, 1
        %s843 = scalar_lea.sflag [#allocation4], %s842
        %s844 = sand.u32 %s139, 1
        %s845 = smul.addr %s844, 2
        %s846 = scalar_lea.vmem [#allocation7], %s845
        // Predicated region
        $region49: #{tpu_custom_call.1} parent=39 // pred_check
          %p847 = pneg %p149
        $region50: #{tpu_custom_call.1} parent=39 // pred_check_branch
          %849 = sbr.rel (%p847) target = $region52
        $region51: #{tpu_custom_call.1} parent=39 // pred_region
          %851 = vsyncadd %s843, 0
          %s852 = smul.addr %s21, 2
          %s853 = scalar_lea.hbm %s5, %s852
          %s855 = sshll.u32 %s846, 4
          %s856 = int_to_ptr.vmem [resolvable:$true] %s855
          %s857 = sshll.u32 %s853, 4
          %s858 = int_to_ptr.hbm [resolvable:$true] %s857
          %860 = dma.vmem_to_hbm [thread:$0]  %s856, 32, %s858, %s843
        $region52: #{tpu_custom_call.1} parent=39 // pred_fallthru
          _
      $region40: #{tpu_custom_call.1} parent=5 // pred_fallthru
        _
      %p861 = scmp.le.s32.totalorder 2, %s16
      // Predicated region
      $region53: #{tpu_custom_call.1} parent=5 // pred_check
        %p862 = pneg %p861
      $region54: #{tpu_custom_call.1} parent=5 // pred_check_branch
        %864 = sbr.rel (%p862) target = $region56
      $region55: #{tpu_custom_call.1} parent=5 // pred_region
        %s865 = ssub.s32 %s16, 2
        // Predicated region
        $region57: #{tpu_custom_call.1} parent=55 // pred_check
          %p866 = pneg %p155
        $region58: #{tpu_custom_call.1} parent=55 // pred_check_branch
          %868 = sbr.rel (%p866) target = $region60
        $region59: #{tpu_custom_call.1} parent=55 // pred_region
          %s869 = sand.u32 %s140, 1
          %s870 = scalar_lea.sflag [#allocation4], %s869
          %s871 = sand.u32 %s140, 1
          %s872 = smul.addr %s871, 2
          %s873 = scalar_lea.vmem [#allocation7], %s872
          %875 = dma.done %s870, 32
        $region60: #{tpu_custom_call.1} parent=55 // pred_fallthru
          _
      $region56: #{tpu_custom_call.1} parent=5 // pred_fallthru
        _
    $region6: #{tpu_custom_call.1} parent=1 // loop_footer
      %s20 = sadd.s32 1, %s16
    $region7: #{tpu_custom_call.1} parent=1 // loop_footer_branch
      %15 = sbr.rel target = $region3
    $region8: #{tpu_custom_call.1} parent=1 // loop_exit
      _
    %876 = vsyncpa [#allocation3], 1
    %s877 = scalar_lea.sflag [#allocation3], 1
    %878 = vsyncpa %s877, 1
    %879 = vsyncpa [#allocation6], 1
    %880 = vsyncpa [#allocation4], 1
    %s881 = scalar_lea.sflag [#allocation4], 1
    %882 = vsyncpa %s881, 1

</llo_original>
